<compile_context>
chip_gen: v7x
topology: tpu7x:2x2x1
jax: 0.10.0
libtpu: 0.0.40
codegen_flags: <defaults>
</compile_context>

<pallas_src>
import functools
from typing import NamedTuple

import jax
import jax.numpy as jnp
from jax.experimental import pallas as pl
from jax.experimental.pallas import tpu as pltpu

HIDDEN = 64          # hidden width of the module (fixed by the spec)
LANE = 128           # lane-padded feature width used inside the kernel
IN_PAD = 16          # rows reserved for layer-1 weights in the f32 slab
OUT_PAD = 8          # narrow output width (requires out_dim <= 8)
SUB = 16             # batch-tile granularity (bf16 sublane pack)
W2_ROWS = LANE       # bf16 slab sections (w2 then w3)
W3_ROWS = LANE
B1_ROW = IN_PAD      # row indices of the biases inside the f32 slab
B2_ROW = IN_PAD + 1
B3_ROW = IN_PAD + 2
F32_ROWS = 24        # IN_PAD + 3 bias rows, rounded up to a multiple of 8
NEG = -1e30          # finite "minus infinity" for padded logit lanes


class PackedPolicyParams(NamedTuple):
    w_slab: jax.Array   # bf16 [256, 128]: rows 0..127 = w2, rows 128..255 = w3
    f_slab: jax.Array   # f32  [24, 128]:  rows 0..15 = w1 (padded), 16/17/18 = b1/b2/b3
    in_dim: int
    out_dim: int


def policy_net_kernel(x_ref, w_ref, f_ref, out_ref, *, bf16_elementwise):
    in_dim = x_ref.shape[1]

    # ---- Layer 1: Linear(in_dim, 64) as VPU rank-1 updates ------------------
    # K = in_dim (=4 for CartPole) is far too small to feed the MXU; doing it
    # on the VPU also removes any need to pad x's feature dim. Padded hidden
    # lanes (>= 64) stay exactly 0 (w1/b1 slab lanes there are 0).
    x = x_ref[...].astype(jnp.float32)                    # [tile, in_dim]
    h1 = f_ref[B1_ROW:B1_ROW + 1, :]                      # b1, [1, 128]
    for k in range(in_dim):                               # unrolled at trace time
        h1 = h1 + x[:, k:k + 1] * f_ref[k:k + 1, :]       # [tile,1] * [1,128]
    if bf16_elementwise:
        h1 = jnp.tanh(h1.astype(jnp.bfloat16))            # bf16 EUP (v6e/v7x)
    else:
        h1 = jnp.tanh(h1).astype(jnp.bfloat16)            # f32 EUP (v5e and older)

    # ---- Layer 2: Linear(64, 64) + Tanh (MXU, bf16 operands, f32 accumulate) --
    w2 = w_ref[0:W2_ROWS, :]                              # [128, 128] bf16
    b2 = f_ref[B2_ROW:B2_ROW + 1, :]                      # [1, 128] f32
    h2 = jnp.dot(h1, w2, preferred_element_type=jnp.float32) + b2
    if bf16_elementwise:
        h2 = jnp.tanh(h2.astype(jnp.bfloat16))
    else:
        h2 = jnp.tanh(h2).astype(jnp.bfloat16)

    # ---- Layer 3: Linear(64, out) + LogSoftmax -------------------------------
    # b3 carries -1e30 in lanes >= out_dim so padded lanes drop out of the
    # normalization (their exp underflows to exactly 0 in f32).
    w3 = w_ref[W2_ROWS:W2_ROWS + W3_ROWS, :]              # [128, 128] bf16
    b3 = f_ref[B3_ROW:B3_ROW + 1, :]                      # [1, 128] f32
    logits = jnp.dot(h2, w3, preferred_element_type=jnp.float32) + b3

    m = jnp.max(logits, axis=-1, keepdims=True)
    shifted = logits - m
    lse = jnp.log(jnp.sum(jnp.exp(shifted), axis=-1, keepdims=True))
    log_probs = shifted - lse                             # [tile, 128] f32

    # Narrow (8-lane) f32 store: only lanes < out_dim are meaningful; the rest
    # hold ~-1e30 and are sliced off by the wrapper.
    out_ref[...] = log_probs[:, :OUT_PAD].astype(out_ref.dtype)


def _round_up(a, b):
    return (a + b - 1) // b * b


@functools.lru_cache(maxsize=1)
def _bf16_elementwise_supported():
    """v6e/v7x have a bf16 VPU/EUP; v5e and older do not -> keep f32 there."""
    try:
        kind = jax.devices()[0].device_kind.lower()
    except Exception:  # pragma: no cover
        return False
    return not any(v in kind for v in ("v2", "v3", "v4", "v5"))


def pack_params(params):
    """Pack weights ONCE (init / param-update time) into two resident slabs.

    Returns PackedPolicyParams; pass the result to policy_network_forward so
    the per-step rollout path does no repacking.
    """
    w1, b1 = params["w1"], params["b1"]   # [in, 64], [64]
    w2, b2 = params["w2"], params["b2"]   # [64, 64], [64]
    w3, b3 = params["w3"], params["b3"]   # [64, out], [out]
    in_dim = int(w1.shape[0])
    out_dim = int(w3.shape[1])
    assert in_dim <= IN_PAD, "input_dim must be <= 16"
    assert out_dim <= OUT_PAD, "output_dim must be <= 8"
    assert w1.shape[1] == HIDDEN and w2.shape == (HIDDEN, HIDDEN) and w3.shape[0] == HIDDEN

    # bf16 slab: w2 then w3 (MXU operands), zero-padded to [256, 128].
    w_slab = jnp.zeros((W2_ROWS + W3_ROWS, LANE), jnp.float32)
    w_slab = w_slab.at[:HIDDEN, :HIDDEN].set(w2.astype(jnp.float32))
    w_slab = w_slab.at[W2_ROWS:W2_ROWS + HIDDEN, :out_dim].set(w3.astype(jnp.float32))
    w_slab = w_slab.astype(jnp.bfloat16)

    # f32 slab: layer-1 weights (VPU path, full precision) + the three biases.
    f_slab = jnp.zeros((F32_ROWS, LANE), jnp.float32)
    f_slab = f_slab.at[:in_dim, :HIDDEN].set(w1.astype(jnp.float32))
    f_slab = f_slab.at[B1_ROW, :HIDDEN].set(b1.astype(jnp.float32))
    f_slab = f_slab.at[B2_ROW, :HIDDEN].set(b2.astype(jnp.float32))
    f_slab = f_slab.at[B3_ROW, :].set(NEG)
    f_slab = f_slab.at[B3_ROW, :out_dim].set(b3.astype(jnp.float32))

    return PackedPolicyParams(w_slab=w_slab, f_slab=f_slab,
                              in_dim=in_dim, out_dim=out_dim)


def policy_network_forward(x, packed, *, tile_b=2048):
    """x: [B, input_dim] float32 (or bf16); packed: PackedPolicyParams."""
    if isinstance(packed, dict):
        # Convenience only; for hot rollout loops call pack_params() once.
        packed = pack_params(packed)
    B, in_dim = x.shape
    assert in_dim == packed.in_dim
    out_dim = packed.out_dim

    # bf16 at the call boundary: halves input DMA bytes; kernel math is bf16/f32.
    x = x.astype(jnp.bfloat16)

    if B < 2 * SUB:
        # Tiny batches (single-env rollout): one grid step, block dims equal the
        # full array dims, no wrapper-side padding at all.
        tile = B
        b_pad = B
    else:
        # >= 2 parallel grid steps so megacore sharding engages on v7x, capped
        # at tile_b rows per step (comfortably inside v7x's 64 MiB VMEM given
        # the narrow output); batch tiles are multiples of the bf16 pack (16).
        tile = max(SUB, min(_round_up(tile_b, SUB), _round_up(pl.cdiv(B, 2), SUB)))
        b_pad = _round_up(B, tile)
        if b_pad != B:
            x = jnp.pad(x, ((0, b_pad - B), (0, 0)))   # batch-axis pad only

    grid = (b_pad // tile,)
    kernel = functools.partial(policy_net_kernel,
                               bf16_elementwise=_bf16_elementwise_supported())

    out = pl.pallas_call(
        kernel,
        out_shape=jax.ShapeDtypeStruct((b_pad, OUT_PAD), jnp.float32),
        grid=grid,
        in_specs=[
            pl.BlockSpec((tile, in_dim), lambda i: (i, 0)),       # x tile
            pl.BlockSpec(packed.w_slab.shape, lambda i: (0, 0)),  # resident bf16 weights
            pl.BlockSpec(packed.f_slab.shape, lambda i: (0, 0)),  # resident f32 w1+biases
        ],
        out_specs=pl.BlockSpec((tile, OUT_PAD), lambda i: (i, 0)),
        compiler_params=pltpu.CompilerParams(
            dimension_semantics=("parallel",),        # megacore on v7x
            vmem_limit_bytes=32 * 1024 * 1024,        # safe on v5e/v6e/v7x
        ),
    )(x, packed.w_slab, packed.f_slab)

    return out[:B, :out_dim]


def init_params(key, input_dim, output_dim, hidden_dim=HIDDEN):
    """PyTorch-Linear-style init: U(-1/sqrt(fan_in), 1/sqrt(fan_in))."""
    ks = jax.random.split(key, 6)

    def lin(kw, kb, fan_in, fan_out):
        bound = 1.0 / jnp.sqrt(fan_in)
        w = jax.random.uniform(kw, (fan_in, fan_out), jnp.float32, -bound, bound)
        b = jax.random.uniform(kb, (fan_out,), jnp.float32, -bound, bound)
        return w, b

    w1, b1 = lin(ks[0], ks[1], input_dim, hidden_dim)
    w2, b2 = lin(ks[2], ks[3], hidden_dim, hidden_dim)
    w3, b3 = lin(ks[4], ks[5], hidden_dim, output_dim)
    return {"w1": w1, "b1": b1, "w2": w2, "b2": b2, "w3": w3, "b3": b3}


def reference_forward(x, params):
    h1 = jnp.tanh(x @ params["w1"] + params["b1"])
    h2 = jnp.tanh(h1 @ params["w2"] + params["b2"])
    logits = h2 @ params["w3"] + params["b3"]
    return jax.nn.log_softmax(logits, axis=-1)


if __name__ == "__main__":
    key = jax.random.PRNGKey(0)
    k_x, k_p = jax.random.split(key)

    batch = 8
    input_dim = 4     # CartPole observation dim
    output_dim = 2    # CartPole action dim

    x = jax.random.normal(k_x, (batch, input_dim), jnp.float32)
    params = init_params(k_p, input_dim, output_dim)

    # Pack ONCE (hoisted out of the per-step path, per the performance review).
    packed = pack_params(params)
    jax.block_until_ready((packed.w_slab, packed.f_slab))

    log_probs = policy_network_forward(x, packed)
    jax.block_until_ready(log_probs)

    assert log_probs.shape == (batch, output_dim)

    # Rows of exp(log_probs) must sum to 1 (exact by construction of logsumexp;
    # padded lanes underflow to exactly 0 in f32).
    row_sums = jnp.sum(jnp.exp(log_probs), axis=-1)
    assert bool(jnp.all(jnp.abs(row_sums - 1.0) < 1e-5))

    # Loose check vs. a pure-JAX f32 reference (kernel uses bf16 x / bf16 MXU
    # operands, so ~1e-2-level differences are expected and acceptable).
    ref = reference_forward(x, params)
    assert bool(jnp.all(jnp.abs(log_probs - ref) < 1e-1))

    print("KERNEL_OK")
</pallas_src>

<mosaic_0001>
module attributes {stable_mosaic.version = 11 : i64} {
  func.func @policy_net_kernel(%arg0: i32, %arg1: memref<8x4xbf16, #tpu.memory_space<vmem>>, %arg2: memref<256x128xbf16, #tpu.memory_space<vmem>>, %arg3: memref<24x128xf32, #tpu.memory_space<vmem>>, %arg4: memref<8x8xf32, #tpu.memory_space<vmem>>) attributes {dimension_semantics = [#tpu.dimension_semantics<parallel>], iteration_bounds = array<i64: 1>, scalar_prefetch = 0 : i64, scratch_operands = 0 : i64, tpu.core_type = #tpu.core_type<tc>, window_params = [{transform_indices = @transform_0, window_bounds = array<i64: 8, 4>}, {pipeline_mode = #tpu.pipeline_mode<synchronous>, transform_indices = @transform_1, window_bounds = array<i64: 256, 128>}, {pipeline_mode = #tpu.pipeline_mode<synchronous>, transform_indices = @transform_2, window_bounds = array<i64: 24, 128>}, {transform_indices = @transform_3, window_bounds = array<i64: 8, 8>}]} {
    %c0 = arith.constant 0 : index
    %c0_0 = arith.constant 0 : index
    %0 = vector.load %arg1[%c0, %c0_0] : memref<8x4xbf16, #tpu.memory_space<vmem>>, vector<8x4xbf16>
    %1 = arith.extf %0 : vector<8x4xbf16> to vector<8x4xf32>
    %c16 = arith.constant 16 : index
    %c0_1 = arith.constant 0 : index
    %2 = vector.load %arg3[%c16, %c0_1] : memref<24x128xf32, #tpu.memory_space<vmem>>, vector<1x128xf32>
    %3 = vector.extract_strided_slice %1 {offsets = [0, 0], sizes = [8, 1], strides = [1, 1]} : vector<8x4xf32> to vector<8x1xf32>
    %c0_2 = arith.constant 0 : index
    %c0_3 = arith.constant 0 : index
    %4 = vector.load %arg3[%c0_2, %c0_3] : memref<24x128xf32, #tpu.memory_space<vmem>>, vector<1x128xf32>
    %5 = vector.broadcast %3 : vector<8x1xf32> to vector<8x128xf32>
    %6 = vector.broadcast %4 : vector<1x128xf32> to vector<8x128xf32>
    %7 = arith.mulf %5, %6 : vector<8x128xf32>
    %8 = vector.broadcast %2 : vector<1x128xf32> to vector<8x128xf32>
    %9 = arith.addf %8, %7 : vector<8x128xf32>
    %10 = vector.extract_strided_slice %1 {offsets = [0, 1], sizes = [8, 1], strides = [1, 1]} : vector<8x4xf32> to vector<8x1xf32>
    %c1 = arith.constant 1 : index
    %c0_4 = arith.constant 0 : index
    %11 = vector.load %arg3[%c1, %c0_4] : memref<24x128xf32, #tpu.memory_space<vmem>>, vector<1x128xf32>
    %12 = vector.broadcast %10 : vector<8x1xf32> to vector<8x128xf32>
    %13 = vector.broadcast %11 : vector<1x128xf32> to vector<8x128xf32>
    %14 = arith.mulf %12, %13 : vector<8x128xf32>
    %15 = arith.addf %9, %14 : vector<8x128xf32>
    %16 = vector.extract_strided_slice %1 {offsets = [0, 2], sizes = [8, 1], strides = [1, 1]} : vector<8x4xf32> to vector<8x1xf32>
    %c2 = arith.constant 2 : index
    %c0_5 = arith.constant 0 : index
    %17 = vector.load %arg3[%c2, %c0_5] : memref<24x128xf32, #tpu.memory_space<vmem>>, vector<1x128xf32>
    %18 = vector.broadcast %16 : vector<8x1xf32> to vector<8x128xf32>
    %19 = vector.broadcast %17 : vector<1x128xf32> to vector<8x128xf32>
    %20 = arith.mulf %18, %19 : vector<8x128xf32>
    %21 = arith.addf %15, %20 : vector<8x128xf32>
    %22 = vector.extract_strided_slice %1 {offsets = [0, 3], sizes = [8, 1], strides = [1, 1]} : vector<8x4xf32> to vector<8x1xf32>
    %c3 = arith.constant 3 : index
    %c0_6 = arith.constant 0 : index
    %23 = vector.load %arg3[%c3, %c0_6] : memref<24x128xf32, #tpu.memory_space<vmem>>, vector<1x128xf32>
    %24 = vector.broadcast %22 : vector<8x1xf32> to vector<8x128xf32>
    %25 = vector.broadcast %23 : vector<1x128xf32> to vector<8x128xf32>
    %26 = arith.mulf %24, %25 : vector<8x128xf32>
    %27 = arith.addf %21, %26 : vector<8x128xf32>
    %28 = arith.truncf %27 : vector<8x128xf32> to vector<8x128xbf16>
    %29 = math.tanh %28 : vector<8x128xbf16>
    %c0_7 = arith.constant 0 : index
    %c0_8 = arith.constant 0 : index
    %30 = vector.load %arg2[%c0_7, %c0_8] : memref<256x128xbf16, #tpu.memory_space<vmem>>, vector<128x128xbf16>
    %c17 = arith.constant 17 : index
    %c0_9 = arith.constant 0 : index
    %31 = vector.load %arg3[%c17, %c0_9] : memref<24x128xf32, #tpu.memory_space<vmem>>, vector<1x128xf32>
    %cst = arith.constant dense<0.000000e+00> : vector<8x128xf32>
    %32 = tpu.matmul %29, %30, %cst {dimension_numbers = #tpu.dot_dimension_numbers<[1], [0], [0], [1], [0, 0, 1, 1], [], []>} : vector<8x128xbf16>, vector<128x128xbf16>, vector<8x128xf32> -> vector<8x128xf32>
    %33 = vector.broadcast %31 : vector<1x128xf32> to vector<8x128xf32>
    %34 = arith.addf %32, %33 : vector<8x128xf32>
    %35 = arith.truncf %34 : vector<8x128xf32> to vector<8x128xbf16>
    %36 = math.tanh %35 : vector<8x128xbf16>
    %c128 = arith.constant 128 : index
    %c0_10 = arith.constant 0 : index
    %37 = vector.load %arg2[%c128, %c0_10] : memref<256x128xbf16, #tpu.memory_space<vmem>>, vector<128x128xbf16>
    %c18 = arith.constant 18 : index
    %c0_11 = arith.constant 0 : index
    %38 = vector.load %arg3[%c18, %c0_11] : memref<24x128xf32, #tpu.memory_space<vmem>>, vector<1x128xf32>
    %cst_12 = arith.constant dense<0.000000e+00> : vector<8x128xf32>
    %39 = tpu.matmul %36, %37, %cst_12 {dimension_numbers = #tpu.dot_dimension_numbers<[1], [0], [0], [1], [0, 0, 1, 1], [], []>} : vector<8x128xbf16>, vector<128x128xbf16>, vector<8x128xf32> -> vector<8x128xf32>
    %40 = vector.broadcast %38 : vector<1x128xf32> to vector<8x128xf32>
    %41 = arith.addf %39, %40 : vector<8x128xf32>
    %cst_13 = arith.constant dense<0xFF800000> : vector<8xf32>
    %42 = vector.multi_reduction <maximumf>, %41, %cst_13 [1] : vector<8x128xf32> to vector<8xf32>
    %43 = vector.shape_cast %42 : vector<8xf32> to vector<8x1xf32>
    %44 = vector.broadcast %43 : vector<8x1xf32> to vector<8x128xf32>
    %45 = arith.subf %41, %44 : vector<8x128xf32>
    %46 = math.exp %45 : vector<8x128xf32>
    %cst_14 = arith.constant dense<0.000000e+00> : vector<8xf32>
    %47 = vector.multi_reduction <add>, %46, %cst_14 [1] : vector<8x128xf32> to vector<8xf32>
    %48 = vector.shape_cast %47 : vector<8xf32> to vector<8x1xf32>
    %49 = math.log %48 : vector<8x1xf32>
    %50 = vector.broadcast %49 : vector<8x1xf32> to vector<8x128xf32>
    %51 = arith.subf %45, %50 : vector<8x128xf32>
    %52 = vector.extract_strided_slice %51 {offsets = [0, 0], sizes = [8, 8], strides = [1, 1]} : vector<8x128xf32> to vector<8x8xf32>
    %c0_15 = arith.constant 0 : index
    %c0_16 = arith.constant 0 : index
    %53 = vector.load %arg4[%c0_15, %c0_16] : memref<8x8xf32, #tpu.memory_space<vmem>>, vector<8x8xf32>
    tpu.vector_store %arg4[%c0_15, %c0_16], %52 {strides = array<i32>} : memref<8x8xf32, #tpu.memory_space<vmem>>, vector<8x8xf32>,
    return
  }
  func.func @transform_0(%arg0: i32) -> (i32, i32) {
    %c0_i32 = arith.constant 0 : i32
    %c0_i32_0 = arith.constant 0 : i32
    return %arg0, %c0_i32 : i32, i32
  }
  func.func @transform_1(%arg0: i32) -> (i32, i32) {
    %c0_i32 = arith.constant 0 : i32
    %c0_i32_0 = arith.constant 0 : i32
    %c0_i32_1 = arith.constant 0 : i32
    return %c0_i32, %c0_i32_0 : i32, i32
  }
  func.func @transform_2(%arg0: i32) -> (i32, i32) {
    %c0_i32 = arith.constant 0 : i32
    %c0_i32_0 = arith.constant 0 : i32
    %c0_i32_1 = arith.constant 0 : i32
    return %c0_i32, %c0_i32_0 : i32, i32
  }
  func.func @transform_3(%arg0: i32) -> (i32, i32) {
    %c0_i32 = arith.constant 0 : i32
    %c0_i32_0 = arith.constant 0 : i32
    return %arg0, %c0_i32 : i32, i32
  }
}

</mosaic_0001>

<llo_original>
// kernel: tpu_custom_call.1
$region0: #{tpu_custom_call.1}
  #allocation0 [shape = 'u32[]', space=smem, size = 0x4, offset = 0x4, fixed_abs, tag = 'smem constant byte address 0x4 - core index']
  #allocation1 [shape = 'u32[144,128]{1,0:T(1,128)}', space=vmem, size = 0x12000, scoped, tag = 'internal scratch']
  %s0 = inlined_call_operand.vmem [shape: bf16[8,4], index: 0, kind: input, shape index: {}]
  %s1 = inlined_call_operand.hbm [shape: bf16[256,128], index: 1, kind: input, shape index: {}]
  %s2 = inlined_call_operand.hbm [shape: f32[24,128], index: 2, kind: input, shape index: {}]
  %s3 = inlined_call_operand.hbm [shape: f32[8,8], index: 3, kind: output, shape index: {}]
  %s4 = sld [smem:[#allocation0]]
  $region30: #{tpu_custom_call.1} parent=0
    _
  %s6 = ssub.s32 1, %s4
  %s7 = scalar_select 0, %s6, %s4
  $region1: #{tpu_custom_call.1} parent=0
    #allocation2 [shape = 'u8[65536]{0}', space=vmem, size = 0x10000, scoped, tag = 'input window, operand 1, single buffered']
    #allocation3 [shape = 's32[1]{0}', space=sflag, size = 0x4, scoped, tag = 'scoped memory for tpu_custom_call.1']
    #allocation4 [shape = 's32[1]{0}', space=sflag, size = 0x4, scoped, tag = 'scoped memory for tpu_custom_call.1']
    #allocation5 [shape = 'u8[12288]{0}', space=vmem, size = 0x3000, scoped, tag = 'input window, operand 2, single buffered']
    #allocation6 [shape = 's32[1]{0}', space=sflag, size = 0x4, scoped, tag = 'scoped memory for tpu_custom_call.1']
    #allocation7 [shape = 'u8[4096]{0}', space=vmem, size = 0x1000, scoped, tag = 'output window, operand 0, single buffered']
    %8 = vsyncpa [#allocation3], 0
    %9 = vsyncpa [#allocation6], 0
    %10 = vsyncpa [#allocation4], 0
    // Predicated region
    $region2: #{tpu_custom_call.1} parent=1 // pred_check
      _
    $region3: #{tpu_custom_call.1} parent=1 // pred_check_branch
      %12 = sbr.rel (0) target = $region5
    $region4: #{tpu_custom_call.1} parent=1 // pred_region
      _
    $region5: #{tpu_custom_call.1} parent=1 // pred_fallthru
      _
    // Predicated region
    $region6: #{tpu_custom_call.1} parent=1 // pred_check
      _
    $region7: #{tpu_custom_call.1} parent=1 // pred_check_branch
      %14 = sbr.rel (0) target = $region9
    $region8: #{tpu_custom_call.1} parent=1 // pred_region
      %s16 = ssub.s32 2048, 2048
      %17 = vsyncadd [#allocation3], %s16
      %s18 = sshll.u32 [#allocation2], 4
      %s19 = int_to_ptr.vmem [resolvable:$true] %s18
      %24 = dma.hbm_to_vmem [thread:$0]  %s1, 2048, %s19, [#allocation3], 64, 64, 4
    $region9: #{tpu_custom_call.1} parent=1 // pred_fallthru
      _
    // Predicated region
    $region10: #{tpu_custom_call.1} parent=1 // pred_check
      _
    $region11: #{tpu_custom_call.1} parent=1 // pred_check_branch
      %26 = sbr.rel (0) target = $region13
    $region12: #{tpu_custom_call.1} parent=1 // pred_region
      %s28 = ssub.s32 384, 384
      %29 = vsyncadd [#allocation6], %s28
      %s30 = sshll.u32 [#allocation5], 4
      %s31 = int_to_ptr.vmem [resolvable:$true] %s30
      %36 = dma.hbm_to_vmem [thread:$0]  %s2, 384, %s31, [#allocation6], 128, 128, 8
    $region13: #{tpu_custom_call.1} parent=1 // pred_fallthru
      _
    // Predicated region
    $region14: #{tpu_custom_call.1} parent=1 // pred_check
      _
    $region15: #{tpu_custom_call.1} parent=1 // pred_check_branch
      %38 = sbr.rel (0) target = $region17
    $region16: #{tpu_custom_call.1} parent=1 // pred_region
      %39 = dma.done [#allocation3], 2048
    $region17: #{tpu_custom_call.1} parent=1 // pred_fallthru
      _
    // Predicated region
    $region18: #{tpu_custom_call.1} parent=1 // pred_check
      _
    $region19: #{tpu_custom_call.1} parent=1 // pred_check_branch
      %41 = sbr.rel (0) target = $region21
    $region20: #{tpu_custom_call.1} parent=1 // pred_region
      %42 = dma.done [#allocation6], 384
    $region21: #{tpu_custom_call.1} parent=1 // pred_fallthru
      _
    %v44 = vld [vmem:[%s0] sm:$0xf]
    %v45 = vunpack.c.l.bf16 %v44
    %v46 = vld [vmem:[#allocation5 + $0x10] sm:$0x1]
    %v47 = vld [vmem:[#allocation5] sm:$0x1]
    %49 = vset.pattern.permute.xlu0 0
    %50 = vperm.xlu0 %49, %v45
    %v51 = vpop.permute.xlu0 %50
    %v53 = vlaneseq
    %v54 = vshrl.u32 %v53, 7
    %v55 = vsub.s32 0, %v54
    %v56 = vrot.slane %v47, %v55
    %v57 = vmul.f32 %v51, %v56
    %v58 = vlaneseq
    %v59 = vshrl.u32 %v58, 7
    %v60 = vsub.s32 0, %v59
    %v61 = vrot.slane %v46, %v60
    %v62 = vadd.f32 %v61, %v57
    %v63 = vld [vmem:[#allocation5 + $0x1] sm:$0x1]
    %64 = vset.pattern.permute.xlu0 1
    %65 = vperm.xlu0 %64, %v45
    %v66 = vpop.permute.xlu0 %65
    %v68 = vlaneseq
    %v69 = vshrl.u32 %v68, 7
    %v70 = vsub.s32 0, %v69
    %v71 = vrot.slane %v63, %v70
    %v72 = vmul.f32 %v66, %v71
    %v73 = vadd.f32 %v62, %v72
    %v74 = vld [vmem:[#allocation5 + $0x2] sm:$0x1]
    %75 = vset.pattern.permute.xlu0 2
    %76 = vperm.xlu0 %75, %v45
    %v77 = vpop.permute.xlu0 %76
    %v79 = vlaneseq
    %v80 = vshrl.u32 %v79, 7
    %v81 = vsub.s32 0, %v80
    %v82 = vrot.slane %v74, %v81
    %v83 = vmul.f32 %v77, %v82
    %v84 = vadd.f32 %v73, %v83
    %v85 = vld [vmem:[#allocation5 + $0x3] sm:$0x1]
    %86 = vset.pattern.permute.xlu0 3
    %87 = vperm.xlu0 %86, %v45
    %v88 = vpop.permute.xlu0 %87
    %v90 = vlaneseq
    %v91 = vshrl.u32 %v90, 7
    %v92 = vsub.s32 0, %v91
    %v93 = vrot.slane %v85, %v92
    %v94 = vmul.f32 %v88, %v93
    %v95 = vadd.f32 %v84, %v94
    %v96 = vpack.c.bf16 %v95, %v95
    %v97 = vtanh.bf16.pop %v96
    %v98 = vld [vmem:[#allocation2] sm:$0xf]
    %v99 = vld [vmem:[#allocation2 + $0x4] sm:$0xf]
    %v100 = vld [vmem:[#allocation2 + $0x8] sm:$0xf]
    %v101 = vld [vmem:[#allocation2 + $0xc] sm:$0xf]
    %v102 = vld [vmem:[#allocation2 + $0x10] sm:$0xf]
    %v103 = vld [vmem:[#allocation2 + $0x14] sm:$0xf]
    %v104 = vld [vmem:[#allocation2 + $0x18] sm:$0xf]
    %v105 = vld [vmem:[#allocation2 + $0x1c] sm:$0xf]
    %v106 = vld [vmem:[#allocation2 + $0x20] sm:$0xf]
    %v107 = vld [vmem:[#allocation2 + $0x24] sm:$0xf]
    %v108 = vld [vmem:[#allocation2 + $0x28] sm:$0xf]
    %v109 = vld [vmem:[#allocation2 + $0x2c] sm:$0xf]
    %v110 = vld [vmem:[#allocation2 + $0x30] sm:$0xf]
    %v111 = vld [vmem:[#allocation2 + $0x34] sm:$0xf]
    %v112 = vld [vmem:[#allocation2 + $0x38] sm:$0xf]
    %v113 = vld [vmem:[#allocation2 + $0x3c] sm:$0xf]
    %v114 = vld [vmem:[#allocation5 + $0x11] sm:$0x1]
    %v115 = vlaneseq
    %v116 = vshrl.u32 %v115, 7
    %v117 = vsub.s32 0, %v116
    %v118 = vrot.slane %v114, %v117
    %v135 = vunpack.c.l.b16 %v98
    %v136 = vunpack.c.l.b16 %v99
    %v137 = vunpack.c.l.b16 %v100
    %v138 = vunpack.c.l.b16 %v101
    %v139 = vunpack.c.l.b16 %v102
    %v140 = vunpack.c.l.b16 %v103
    %v141 = vunpack.c.l.b16 %v104
    %v142 = vunpack.c.l.b16 %v105
    %v143 = vunpack.c.l.b16 %v106
    %v144 = vunpack.c.l.b16 %v107
    %v145 = vunpack.c.l.b16 %v108
    %v146 = vunpack.c.l.b16 %v109
    %v147 = vunpack.c.l.b16 %v110
    %v148 = vunpack.c.l.b16 %v111
    %v149 = vunpack.c.l.b16 %v112
    %v150 = vunpack.c.l.b16 %v113
    %v151 = vpack.c.b16 %v136, %v135
    %v152 = vpack.c.b16 %v138, %v137
    %v153 = vpack.c.b16 %v140, %v139
    %v154 = vpack.c.b16 %v142, %v141
    %v155 = vpack.c.b16 %v144, %v143
    %v156 = vpack.c.b16 %v146, %v145
    %v157 = vpack.c.b16 %v148, %v147
    %v158 = vpack.c.b16 %v150, %v149
    %167 = vmatprep.subr.bf16.mxu0 0
    %168 = vmatpush1.bf16.msra.mxu0 %v151
    %169 = vmatprep.subr.bf16.mxu0 0
    %170 = vmatpush1.bf16.msra.mxu0 %v152
    %171 = vmatprep.subr.bf16.mxu0 0
    %172 = vmatpush1.bf16.msra.mxu0 %v153
    %173 = vmatprep.subr.bf16.mxu0 0
    %174 = vmatpush1.bf16.msra.mxu0 %v154
    %175 = vmatprep.subr.bf16.mxu0 0
    %176 = vmatpush1.bf16.msra.mxu0 %v155
    %177 = vmatprep.subr.bf16.mxu0 0
    %178 = vmatpush1.bf16.msra.mxu0 %v156
    %179 = vmatprep.subr.bf16.mxu0 0
    %180 = vmatpush1.bf16.msra.mxu0 %v157
    %181 = vmatprep.subr.bf16.mxu0 0
    %182 = vmatpush1.bf16.msra.mxu0 %v158
    %183 = vmatprep.subr.bf16.mxu0 0
    %184 = vmatpush1.bf16.msra.mxu0 0
    %185 = vmatprep.subr.bf16.mxu0 0
    %186 = vmatpush1.bf16.msra.mxu0 0
    %187 = vmatprep.subr.bf16.mxu0 0
    %188 = vmatpush1.bf16.msra.mxu0 0
    %189 = vmatprep.subr.bf16.mxu0 0
    %190 = vmatpush1.bf16.msra.mxu0 0
    %191 = vmatprep.subr.bf16.mxu0 0
    %192 = vmatpush1.bf16.msra.mxu0 0
    %193 = vmatprep.subr.bf16.mxu0 0
    %194 = vmatpush1.bf16.msra.mxu0 0
    %195 = vmatprep.subr.bf16.mxu0 0
    %196 = vmatpush1.bf16.msra.mxu0 0
    %197 = vmatprep.subr.bf16.mxu0 0
    %198 = vmatpush1.bf16.msra.mxu0 0
    %199 = vmatprep.mubr.bf16.mxu0 0
    %200 = vmatmul.mubr.bf16.gmra.mrb[0].mxu0 %v97
    %v201 = vpop.f32.mrb[0].mxu0
    %v202 = vadd.f32 %v118, %v201
    %v203 = vpop.f32.mrb[0].mxu0
    %v204 = vpop.f32.mrb[0].mxu0
    %v205 = vpop.f32.mrb[0].mxu0
    %206 = vdwg.mxu0
    %v207 = vpack.c.bf16 %v202, %v202
    %v208 = vtanh.bf16.pop %v207
    %v209 = vld [vmem:[#allocation2 + $0x40] sm:$0xf]
    %v210 = vld [vmem:[#allocation2 + $0x44] sm:$0xf]
    %v211 = vld [vmem:[#allocation2 + $0x48] sm:$0xf]
    %v212 = vld [vmem:[#allocation2 + $0x4c] sm:$0xf]
    %v213 = vld [vmem:[#allocation2 + $0x50] sm:$0xf]
    %v214 = vld [vmem:[#allocation2 + $0x54] sm:$0xf]
    %v215 = vld [vmem:[#allocation2 + $0x58] sm:$0xf]
    %v216 = vld [vmem:[#allocation2 + $0x5c] sm:$0xf]
    %v217 = vld [vmem:[#allocation2 + $0x60] sm:$0xf]
    %v218 = vld [vmem:[#allocation2 + $0x64] sm:$0xf]
    %v219 = vld [vmem:[#allocation2 + $0x68] sm:$0xf]
    %v220 = vld [vmem:[#allocation2 + $0x6c] sm:$0xf]
    %v221 = vld [vmem:[#allocation2 + $0x70] sm:$0xf]
    %v222 = vld [vmem:[#allocation2 + $0x74] sm:$0xf]
    %v223 = vld [vmem:[#allocation2 + $0x78] sm:$0xf]
    %v224 = vld [vmem:[#allocation2 + $0x7c] sm:$0xf]
    %v225 = vld [vmem:[#allocation5 + $0x12] sm:$0x1]
    %v226 = vlaneseq
    %v227 = vshrl.u32 %v226, 7
    %v228 = vsub.s32 0, %v227
    %v229 = vrot.slane %v225, %v228
    %v246 = vunpack.c.l.b16 %v209
    %v247 = vunpack.c.l.b16 %v210
    %v248 = vunpack.c.l.b16 %v211
    %v249 = vunpack.c.l.b16 %v212
    %v250 = vunpack.c.l.b16 %v213
    %v251 = vunpack.c.l.b16 %v214
    %v252 = vunpack.c.l.b16 %v215
    %v253 = vunpack.c.l.b16 %v216
    %v254 = vunpack.c.l.b16 %v217
    %v255 = vunpack.c.l.b16 %v218
    %v256 = vunpack.c.l.b16 %v219
    %v257 = vunpack.c.l.b16 %v220
    %v258 = vunpack.c.l.b16 %v221
    %v259 = vunpack.c.l.b16 %v222
    %v260 = vunpack.c.l.b16 %v223
    %v261 = vunpack.c.l.b16 %v224
    %v262 = vpack.c.b16 %v247, %v246
    %v263 = vpack.c.b16 %v249, %v248
    %v264 = vpack.c.b16 %v251, %v250
    %v265 = vpack.c.b16 %v253, %v252
    %v266 = vpack.c.b16 %v255, %v254
    %v267 = vpack.c.b16 %v257, %v256
    %v268 = vpack.c.b16 %v259, %v258
    %v269 = vpack.c.b16 %v261, %v260
    %278 = vmatprep.subr.bf16.mxu0 0
    %279 = vmatpush1.bf16.msra.mxu0 %v262
    %280 = vmatprep.subr.bf16.mxu0 0
    %281 = vmatpush1.bf16.msra.mxu0 %v263
    %282 = vmatprep.subr.bf16.mxu0 0
    %283 = vmatpush1.bf16.msra.mxu0 %v264
    %284 = vmatprep.subr.bf16.mxu0 0
    %285 = vmatpush1.bf16.msra.mxu0 %v265
    %286 = vmatprep.subr.bf16.mxu0 0
    %287 = vmatpush1.bf16.msra.mxu0 %v266
    %288 = vmatprep.subr.bf16.mxu0 0
    %289 = vmatpush1.bf16.msra.mxu0 %v267
    %290 = vmatprep.subr.bf16.mxu0 0
    %291 = vmatpush1.bf16.msra.mxu0 %v268
    %292 = vmatprep.subr.bf16.mxu0 0
    %293 = vmatpush1.bf16.msra.mxu0 %v269
    %294 = vmatprep.subr.bf16.mxu0 0
    %295 = vmatpush1.bf16.msra.mxu0 0
    %296 = vmatprep.subr.bf16.mxu0 0
    %297 = vmatpush1.bf16.msra.mxu0 0
    %298 = vmatprep.subr.bf16.mxu0 0
    %299 = vmatpush1.bf16.msra.mxu0 0
    %300 = vmatprep.subr.bf16.mxu0 0
    %301 = vmatpush1.bf16.msra.mxu0 0
    %302 = vmatprep.subr.bf16.mxu0 0
    %303 = vmatpush1.bf16.msra.mxu0 0
    %304 = vmatprep.subr.bf16.mxu0 0
    %305 = vmatpush1.bf16.msra.mxu0 0
    %306 = vmatprep.subr.bf16.mxu0 0
    %307 = vmatpush1.bf16.msra.mxu0 0
    %308 = vmatprep.subr.bf16.mxu0 0
    %309 = vmatpush1.bf16.msra.mxu0 0
    %310 = vmatprep.mubr.bf16.mxu0 0
    %311 = vmatmul.mubr.bf16.gmra.mrb[0].mxu0 %v208
    %v312 = vpop.f32.mrb[0].mxu0
    %v313 = vadd.f32 %v229, %v312
    %v314 = vpop.f32.mrb[0].mxu0
    %v315 = vpop.f32.mrb[0].mxu0
    %v316 = vpop.f32.mrb[0].mxu0
    %317 = vdwg.mxu0
    %318 = vmax.xlane.f32.xlu0 %v313
    %v319 = vpop.xlane.xlu0 %318
    %v320 = vsub.f32 %v313, %v319
    %v321 = vmul.f32 %v320, 1.442695
    %v322 = vpow.pop %v321
    %323 = vadd.xlane.f32.xlu0 %v322
    %v324 = vpop.xlane.xlu0 %323
    %v325 = vlog2.pop %v324
    %v326 = vmul.f32 %v325, 0.6931472
    %v327 = vsub.f32 %v320, %v326
    %vm328 = vcmask 64512
    %329 = vst.msk [vmem:[#allocation7] sm:$0xff] %vm328, %v327
    // Predicated region
    $region22: #{tpu_custom_call.1} parent=1 // pred_check
      _
    $region23: #{tpu_custom_call.1} parent=1 // pred_check_branch
      %331 = sbr.rel (0) target = $region25
    $region24: #{tpu_custom_call.1} parent=1 // pred_region
      %s333 = ssub.s32 128, 128
      %334 = vsyncadd [#allocation4], %s333
      %s336 = sshll.u32 [#allocation7], 4
      %s337 = int_to_ptr.vmem [resolvable:$true] %s336
      %339 = dma.vmem_to_hbm [thread:$0]  %s337, 128, %s3, [#allocation4]
    $region25: #{tpu_custom_call.1} parent=1 // pred_fallthru
      _
    // Predicated region
    $region26: #{tpu_custom_call.1} parent=1 // pred_check
      _
    $region27: #{tpu_custom_call.1} parent=1 // pred_check_branch
      %341 = sbr.rel (0) target = $region29
    $region28: #{tpu_custom_call.1} parent=1 // pred_region
      %342 = dma.done [#allocation4], 128
    $region29: #{tpu_custom_call.1} parent=1 // pred_fallthru
      _
    %343 = vsyncpa [#allocation3], 1
    %344 = vsyncpa [#allocation6], 1
    %345 = vsyncpa [#allocation4], 1

</llo_original>
